<compile_context>
chip_gen: v6e
topology: v6e:2x2x1
jax: 0.10.0
libtpu: 0.0.40
codegen_flags: <defaults>
</compile_context>

<pallas_src>
import functools

import jax
import jax.numpy as jnp
from jax import lax
from jax.experimental import pallas as pl
from jax.experimental.pallas import tpu as pltpu


def balanced_ce_kernel(logits_ref, labels_ref, cw_ref, out_ref, acc_ref, *,
                       inv_batch):
    step = pl.program_id(1)

    # Zero the lane-shaped accumulator at the start of this core's batch slice.
    @pl.when(step == 0)
    def _init():
        acc_ref[...] = jnp.zeros_like(acc_ref)

    x = logits_ref[...]                                   # (C, TN) f32
    labels = labels_ref[...]                              # (1, TN) i32
    cw = cw_ref[...]                                      # (C, 1)  f32 (resident)
    num_classes, tn = x.shape

    # Numerically stable log-softmax over the class (sublane) axis.
    m = jnp.max(x, axis=0, keepdims=True)                 # (1, TN)
    s = x - m
    lse = jnp.log(jnp.sum(jnp.exp(s), axis=0, keepdims=True))   # (1, TN)

    # One-hot(label) over the C sublane rows does both gathers (pure VPU/XLU work).
    cls = lax.broadcasted_iota(jnp.int32, (num_classes, tn), 0)
    onehot = (cls == labels).astype(jnp.float32)          # (C, TN); label=-1 pad -> all zero
    s_label = jnp.sum(onehot * s, axis=0, keepdims=True)  # (1, TN)
    w_label = jnp.sum(onehot * cw, axis=0, keepdims=True) # (1, TN)

    # -w * log_prob[label] == w * (lse - s_label); padded lanes contribute 0.
    acc_ref[...] += w_label * (lse - s_label)

    # Collapse to this core's scalar partial (already scaled by 1/B) once.
    @pl.when(step == pl.num_programs(1) - 1)
    def _finalize():
        total = jnp.sum(acc_ref[...], axis=1, keepdims=True)    # (1, 1)
        out_ref[...] = (total * jnp.float32(inv_batch)).reshape(1, 1, 1)


def _cdiv(a, b):
    return (a + b - 1) // b


def _round_up(x, m):
    return _cdiv(x, m) * m


NUM_CORES = 2        # per-core partial sums; harmless on 1-TC chips (v5e/v6e)
DEFAULT_MAX_TN = 65536


@functools.partial(jax.jit, static_argnames=("max_tn",))
def balanced_cross_entropy_loss(logits, labels, class_weights, *, max_tn=DEFAULT_MAX_TN):
    """logits [B, C] f32, labels [B] int, class_weights [C] f32 -> scalar loss."""
    B, C = logits.shape

    TN = min(max_tn, _round_up(_cdiv(B, NUM_CORES), 128))     # batch lanes per step
    steps = _cdiv(B, NUM_CORES * TN)                          # grid steps per core
    B_pad = NUM_CORES * steps * TN

    # Lane = batch layout: transpose logits to (C, B) and pad the batch only.
    logits_t = jnp.zeros((C, B_pad), jnp.float32).at[:, :B].set(
        logits.astype(jnp.float32).T)
    labels_p = jnp.full((1, B_pad), -1, jnp.int32).at[0, :B].set(
        labels.astype(jnp.int32))
    cw_p = class_weights.astype(jnp.float32).reshape(C, 1)

    kernel = functools.partial(balanced_ce_kernel, inv_batch=1.0 / B)
    col_map = lambda c, i: (0, c * steps + i)   # each core owns a contiguous half

    partials = pl.pallas_call(
        kernel,
        out_shape=jax.ShapeDtypeStruct((NUM_CORES, 1, 1), jnp.float32),
        grid_spec=pltpu.PrefetchScalarGridSpec(
            num_scalar_prefetch=0,
            grid=(NUM_CORES, steps),
            in_specs=[
                pl.BlockSpec((C, TN), col_map),                 # logits tile
                pl.BlockSpec((1, TN), col_map),                 # labels tile
                pl.BlockSpec((C, 1), lambda c, i: (0, 0)),      # class weights (resident)
            ],
            out_specs=pl.BlockSpec((1, 1, 1), lambda c, i: (c, 0, 0)),  # per-core partial
            scratch_shapes=[pltpu.VMEM((1, TN), jnp.float32)],  # lane-shaped accumulator
        ),
        compiler_params=pltpu.CompilerParams(
            dimension_semantics=("parallel", "arbitrary")),
    )(logits_t, labels_p, cw_p)

    return jnp.sum(partials)


def reference_loss(logits, labels, class_weights):
    """Plain-JAX mirror of the PyTorch module."""
    logp = jax.nn.log_softmax(logits.astype(jnp.float32), axis=-1)
    gathered = jnp.take_along_axis(logp, labels[:, None], axis=-1)[:, 0]
    w = class_weights[labels]
    return -jnp.sum(w * gathered) / labels.shape[0]


if __name__ == "__main__":
    key = jax.random.PRNGKey(0)
    k1, k2, k3, k4, k5, k6 = jax.random.split(key, 6)

    # 1) Small batch consistent with the module: logits [8, 3], labels [8].
    B, C = 8, 3
    logits = jax.random.normal(k1, (B, C), dtype=jnp.float32) * 2.0
    labels = jax.random.randint(k2, (B,), 0, C, dtype=jnp.int32)
    class_weights = jnp.array([0.5, 2.0, 1.0], dtype=jnp.float32)

    loss = jax.block_until_ready(balanced_cross_entropy_loss(logits, labels, class_weights))
    ref = reference_loss(logits, labels, class_weights)
    assert loss.shape == ()
    assert jnp.allclose(loss, ref, atol=1e-4, rtol=1e-4), (loss, ref)

    # 2) Non-128-multiple batch with default unit weights -> batch padding and
    #    both grid halves (one partially padded) exercised.
    B2 = 300
    logits2 = jax.random.normal(k3, (B2, C), dtype=jnp.float32)
    labels2 = jax.random.randint(k4, (B2,), 0, C, dtype=jnp.int32)
    cw_default = jnp.array([1.0, 1.0, 1.0], dtype=jnp.float32)
    loss2 = jax.block_until_ready(balanced_cross_entropy_loss(logits2, labels2, cw_default))
    ref2 = reference_loss(logits2, labels2, cw_default)
    assert jnp.allclose(loss2, ref2, atol=1e-4, rtol=1e-4), (loss2, ref2)

    # 3) Force a multi-step grid (small max_tn) to exercise the in-kernel
    #    accumulator init/accumulate/finalize path across grid steps.
    B3 = 600
    logits3 = jax.random.normal(k5, (B3, C), dtype=jnp.float32)
    labels3 = jax.random.randint(k6, (B3,), 0, C, dtype=jnp.int32)
    loss3 = jax.block_until_ready(
        balanced_cross_entropy_loss(logits3, labels3, class_weights, max_tn=128))
    ref3 = reference_loss(logits3, labels3, class_weights)
    assert jnp.allclose(loss3, ref3, atol=1e-4, rtol=1e-4), (loss3, ref3)

    print("KERNEL_OK")
</pallas_src>

<mosaic_0001>
module attributes {stable_mosaic.version = 11 : i64} {
  func.func @balanced_ce_kernel(%arg0: i32, %arg1: i32, %arg2: memref<3x128xf32, #tpu.memory_space<vmem>>, %arg3: memref<1x128xi32, #tpu.memory_space<vmem>>, %arg4: memref<3x1xf32, #tpu.memory_space<vmem>>, %arg5: memref<1x1x1xf32, #tpu.memory_space<vmem>>, %arg6: memref<1x128xf32, #tpu.memory_space<vmem>>) attributes {dimension_semantics = [#tpu.dimension_semantics<parallel>, #tpu.dimension_semantics<arbitrary>], iteration_bounds = array<i64: 2, 1>, scalar_prefetch = 0 : i64, scratch_operands = 1 : i64, tpu.core_type = #tpu.core_type<tc>, window_params = [{transform_indices = @transform_0, window_bounds = array<i64: 3, 128>}, {transform_indices = @transform_1, window_bounds = array<i64: 1, 128>}, {pipeline_mode = #tpu.pipeline_mode<synchronous>, transform_indices = @transform_2, window_bounds = array<i64: 3, 1>}, {transform_indices = @transform_3, window_bounds = array<i64: 1, 1, 1>}]} {
    %c0_i32 = arith.constant 0 : i32
    %0 = arith.cmpi eq, %arg1, %c0_i32 : i32
    %1 = arith.extui %0 : i1 to i32
    %c0_i32_0 = arith.constant 0 : i32
    %2 = arith.cmpi ne, %1, %c0_i32_0 : i32
    scf.if %2 {
      %cst_15 = arith.constant 0.000000e+00 : f32
      %34 = vector.broadcast %cst_15 : f32 to vector<1x128xf32>
      %c0_16 = arith.constant 0 : index
      %c0_17 = arith.constant 0 : index
      %35 = vector.load %arg6[%c0_16, %c0_17] : memref<1x128xf32, #tpu.memory_space<vmem>>, vector<1x128xf32>
      tpu.vector_store %arg6[%c0_16, %c0_17], %34 {strides = array<i32>} : memref<1x128xf32, #tpu.memory_space<vmem>>, vector<1x128xf32>,
    } else {
    }
    %c0 = arith.constant 0 : index
    %c0_1 = arith.constant 0 : index
    %3 = vector.load %arg2[%c0, %c0_1] : memref<3x128xf32, #tpu.memory_space<vmem>>, vector<3x128xf32>
    %c0_2 = arith.constant 0 : index
    %c0_3 = arith.constant 0 : index
    %4 = vector.load %arg3[%c0_2, %c0_3] : memref<1x128xi32, #tpu.memory_space<vmem>>, vector<1x128xi32>
    %c0_4 = arith.constant 0 : index
    %c0_5 = arith.constant 0 : index
    %5 = vector.load %arg4[%c0_4, %c0_5] : memref<3x1xf32, #tpu.memory_space<vmem>>, vector<3x1xf32>
    %cst = arith.constant dense<0xFF800000> : vector<128xf32>
    %6 = vector.multi_reduction <maximumf>, %3, %cst [0] : vector<3x128xf32> to vector<128xf32>
    %7 = vector.shape_cast %6 : vector<128xf32> to vector<1x128xf32>
    %8 = vector.broadcast %7 : vector<1x128xf32> to vector<3x128xf32>
    %9 = arith.subf %3, %8 : vector<3x128xf32>
    %10 = math.exp %9 : vector<3x128xf32>
    %cst_6 = arith.constant dense<0.000000e+00> : vector<128xf32>
    %11 = vector.multi_reduction <add>, %10, %cst_6 [0] : vector<3x128xf32> to vector<128xf32>
    %12 = vector.shape_cast %11 : vector<128xf32> to vector<1x128xf32>
    %13 = math.log %12 : vector<1x128xf32>
    %14 = tpu.iota {dimensions = array<i32: 0>} : vector<3x128xi32>
    %15 = vector.broadcast %4 : vector<1x128xi32> to vector<3x128xi32>
    %16 = arith.cmpi eq, %14, %15 : vector<3x128xi32>
    %17 = arith.extui %16 : vector<3x128xi1> to vector<3x128xi32>
    %18 = arith.sitofp %17 : vector<3x128xi32> to vector<3x128xf32>
    %19 = arith.mulf %18, %9 : vector<3x128xf32>
    %cst_7 = arith.constant dense<0.000000e+00> : vector<128xf32>
    %20 = vector.multi_reduction <add>, %19, %cst_7 [0] : vector<3x128xf32> to vector<128xf32>
    %21 = vector.shape_cast %20 : vector<128xf32> to vector<1x128xf32>
    %22 = vector.broadcast %5 : vector<3x1xf32> to vector<3x128xf32>
    %23 = arith.mulf %18, %22 : vector<3x128xf32>
    %cst_8 = arith.constant dense<0.000000e+00> : vector<128xf32>
    %24 = vector.multi_reduction <add>, %23, %cst_8 [0] : vector<3x128xf32> to vector<128xf32>
    %25 = vector.shape_cast %24 : vector<128xf32> to vector<1x128xf32>
    %c0_9 = arith.constant 0 : index
    %c0_10 = arith.constant 0 : index
    %26 = vector.load %arg6[%c0_9, %c0_10] : memref<1x128xf32, #tpu.memory_space<vmem>>, vector<1x128xf32>
    %27 = arith.subf %13, %21 : vector<1x128xf32>
    %28 = arith.mulf %25, %27 : vector<1x128xf32>
    %29 = arith.addf %26, %28 : vector<1x128xf32>
    %c0_11 = arith.constant 0 : index
    %c0_12 = arith.constant 0 : index
    %30 = vector.load %arg6[%c0_11, %c0_12] : memref<1x128xf32, #tpu.memory_space<vmem>>, vector<1x128xf32>
    tpu.vector_store %arg6[%c0_11, %c0_12], %29 {strides = array<i32>} : memref<1x128xf32, #tpu.memory_space<vmem>>, vector<1x128xf32>,
    %c0_i32_13 = arith.constant 0 : i32
    %31 = arith.cmpi eq, %arg1, %c0_i32_13 : i32
    %32 = arith.extui %31 : i1 to i32
    %c0_i32_14 = arith.constant 0 : i32
    %33 = arith.cmpi ne, %32, %c0_i32_14 : i32
    scf.if %33 {
      %c0_15 = arith.constant 0 : index
      %c0_16 = arith.constant 0 : index
      %34 = vector.load %arg6[%c0_15, %c0_16] : memref<1x128xf32, #tpu.memory_space<vmem>>, vector<1x128xf32>
      %cst_17 = arith.constant dense<0.000000e+00> : vector<1xf32>
      %35 = vector.multi_reduction <add>, %34, %cst_17 [1] : vector<1x128xf32> to vector<1xf32>
      %36 = vector.shape_cast %35 : vector<1xf32> to vector<1x1xf32>
      %cst_18 = arith.constant 1.250000e-01 : f32
      %37 = vector.broadcast %cst_18 : f32 to vector<1x1xf32>
      %38 = arith.mulf %36, %37 : vector<1x1xf32>
      %39 = vector.shape_cast %38 : vector<1x1xf32> to vector<1x1x1xf32>
      %c0_19 = arith.constant 0 : index
      %c0_20 = arith.constant 0 : index
      %c0_21 = arith.constant 0 : index
      %40 = vector.load %arg5[%c0_19, %c0_20, %c0_21] : memref<1x1x1xf32, #tpu.memory_space<vmem>>, vector<1x1x1xf32>
      tpu.vector_store %arg5[%c0_19, %c0_20, %c0_21], %39 {strides = array<i32>} : memref<1x1x1xf32, #tpu.memory_space<vmem>>, vector<1x1x1xf32>,
    } else {
    }
    return
  }
  func.func @transform_0(%arg0: i32, %arg1: i32) -> (i32, i32) {
    %c1_i32 = arith.constant 1 : i32
    %0 = arith.muli %arg0, %c1_i32 : i32
    %1 = arith.addi %0, %arg1 : i32
    %c0_i32 = arith.constant 0 : i32
    %c0_i32_0 = arith.constant 0 : i32
    return %c0_i32, %1 : i32, i32
  }
  func.func @transform_1(%arg0: i32, %arg1: i32) -> (i32, i32) {
    %c1_i32 = arith.constant 1 : i32
    %0 = arith.muli %arg0, %c1_i32 : i32
    %1 = arith.addi %0, %arg1 : i32
    %c0_i32 = arith.constant 0 : i32
    %c0_i32_0 = arith.constant 0 : i32
    return %c0_i32, %1 : i32, i32
  }
  func.func @transform_2(%arg0: i32, %arg1: i32) -> (i32, i32) {
    %c0_i32 = arith.constant 0 : i32
    %c0_i32_0 = arith.constant 0 : i32
    %c0_i32_1 = arith.constant 0 : i32
    return %c0_i32, %c0_i32_0 : i32, i32
  }
  func.func @transform_3(%arg0: i32, %arg1: i32) -> (i32, i32, i32) {
    %c0_i32 = arith.constant 0 : i32
    %c0_i32_0 = arith.constant 0 : i32
    %c0_i32_1 = arith.constant 0 : i32
    return %arg0, %c0_i32, %c0_i32_0 : i32, i32, i32
  }
}

</mosaic_0001>

<llo_original>
// kernel: balanced_cross_entropy_loss.1
$region0: #{balanced_cross_entropy_loss.1}
  #allocation0 [shape = 'u32[]', space=smem, size = 0x4, offset = 0x4, fixed_abs, tag = 'smem constant byte address 0x4 - core index']
  #allocation1 [shape = 'u32[144,128]{1,0:T(1,128)}', space=vmem, size = 0x12000, scoped, tag = 'internal scratch']
  #allocation2 [shape = 'f32[1,128]{1,0:T(1,128)}', space=vmem, size = 0x200, scoped, tag = 'scratch operand']
  %s0 = inlined_call_operand.vmem [shape: f32[3,256], index: 0, kind: input, shape index: {}]
  %s1 = inlined_call_operand.vmem [shape: s32[1,256], index: 1, kind: input, shape index: {}]
  %s2 = inlined_call_operand.vmem [shape: f32[3,1], index: 2, kind: input, shape index: {}]
  %s3 = inlined_call_operand.vmem [shape: f32[2,1,1], index: 3, kind: output, shape index: {}]
  %s4 = sld [smem:[#allocation0]]
  $region53: #{balanced_cross_entropy_loss.1} parent=0
    _
  %s6 = ssub.s32 1, %s4
  %s7 = scalar_select 0, %s6, %s4
  loop: start=0, step=1, limit=4
  $region2: #{balanced_cross_entropy_loss.1} parent=0 // loop_pre_header
    _
  $region3: #{balanced_cross_entropy_loss.1} parent=0 // loop_header
    %s9 = sphi 0, %s13
    %p10 = scmp.ge.s32.totalorder %s9, 4
    %s16 = sphi 0, %s28
    %s17 = sphi 0, %s24
    %s18 = sphi 0, %s16
    %s19 = sphi 0, %s17
    %s20 = sphi 0, %s18
    %s21 = sphi 0, %s19
    %s33 = sphi 0, %s35
    %s36 = sphi 0, %s33
    %s37 = sphi 0, %s36
    %s53 = sphi 0, %s37
    %s61 = sphi 0, %s63
    %s64 = sphi 0, %s61
    %s65 = sphi 0, %s64
    %s81 = sphi 0, %s65
    %s85 = sphi 0, %s85
    %s87 = sphi 0, %s85
    %s88 = sphi 0, %s87
    %s102 = sphi 0, %s88
    %s108 = sphi 0, %s110
    %s111 = sphi 0, %s108
    %s112 = sphi 0, %s111
    %s128 = sphi 0, %s112
  $region4: #{balanced_cross_entropy_loss.1} parent=0 // loop_header_branch
    %12 = sbr.rel (%p10) target = $region8
  $region5: #{balanced_cross_entropy_loss.1} parent=0 // loop_body
    %s14 = ssub.s32 %s9, 1
    %s15 = ssub.s32 %s9, 2
    %s22 = sadd.s32 1, %s17
    %p23 = scmp.ge.s32.totalorder %s22, 1
    %s24 = scalar_select %p23, 0, %s22
    %s25 = sadd.s32 1, %s16
    %s26 = scalar_select %p23, %s25, %s16
    %p27 = scmp.ge.s32.totalorder %s26, 2
    %s28 = scalar_select %p27, 0, %s26
    %s29 = sadd.s32 %s16, %s17
    %s30 = sadd.s32 %s28, %s24
    %s31 = ssub.s32 %s29, %s30
    %p32 = scmp.eq.s32.totalorder %s31, 0
    %s34 = sadd.s32 %s33, 1
    %s35 = scalar_select %p32, %s33, %s34
    %p38 = pneg %p32
    %p39 = scmp.eq.s32.totalorder %s9, 1
    %p40 = por %p38, %p39
    %p41 = scmp.ne.s32.totalorder %s33, %s36
    %p42 = scmp.eq.s32.totalorder %s9, 0
    %p43 = por %p41, %p42
    %p44 = scmp.ne.s32.totalorder %s33, %s36
    %p45 = scmp.eq.s32.totalorder %s14, 1
    %p46 = por %p44, %p45
    %p47 = scmp.ne.s32.totalorder %s36, %s37
    %p48 = scmp.eq.s32.totalorder %s14, 0
    %p49 = por %p47, %p48
    %p50 = scmp.ne.s32.totalorder %s36, %s37
    %p51 = scmp.eq.s32.totalorder %s15, 1
    %p52 = por %p50, %p51
    %p54 = scmp.ne.s32.totalorder %s37, %s53
    %p55 = scmp.eq.s32.totalorder %s15, 0
    %p56 = por %p54, %p55
    %s57 = sadd.s32 %s16, %s17
    %s58 = sadd.s32 %s28, %s24
    %s59 = ssub.s32 %s57, %s58
    %p60 = scmp.eq.s32.totalorder %s59, 0
    %s62 = sadd.s32 %s61, 1
    %s63 = scalar_select %p60, %s61, %s62
    %p66 = pneg %p60
    %p67 = scmp.eq.s32.totalorder %s9, 1
    %p68 = por %p66, %p67
    %p69 = scmp.ne.s32.totalorder %s61, %s64
    %p70 = scmp.eq.s32.totalorder %s9, 0
    %p71 = por %p69, %p70
    %p72 = scmp.ne.s32.totalorder %s61, %s64
    %p73 = scmp.eq.s32.totalorder %s14, 1
    %p74 = por %p72, %p73
    %p75 = scmp.ne.s32.totalorder %s64, %s65
    %p76 = scmp.eq.s32.totalorder %s14, 0
    %p77 = por %p75, %p76
    %p78 = scmp.ne.s32.totalorder %s64, %s65
    %p79 = scmp.eq.s32.totalorder %s15, 1
    %p80 = por %p78, %p79
    %p82 = scmp.ne.s32.totalorder %s65, %s81
    %p83 = scmp.eq.s32.totalorder %s15, 0
    %p84 = por %p82, %p83
    %s86 = sadd.s32 %s85, 1
    %p89 = scmp.eq.s32.totalorder %s9, 1
    %p90 = scmp.ne.s32.totalorder %s85, %s87
    %p91 = scmp.eq.s32.totalorder %s9, 0
    %p92 = por %p90, %p91
    %p93 = scmp.ne.s32.totalorder %s85, %s87
    %p94 = scmp.eq.s32.totalorder %s14, 1
    %p95 = por %p93, %p94
    %p96 = scmp.ne.s32.totalorder %s87, %s88
    %p97 = scmp.eq.s32.totalorder %s14, 0
    %p98 = por %p96, %p97
    %p99 = scmp.ne.s32.totalorder %s87, %s88
    %p100 = scmp.eq.s32.totalorder %s15, 1
    %p101 = por %p99, %p100
    %p103 = scmp.ne.s32.totalorder %s88, %s102
    %p104 = scmp.eq.s32.totalorder %s15, 0
    %p105 = por %p103, %p104
    %s106 = ssub.s32 %s16, %s28
    %p107 = scmp.eq.s32.totalorder %s106, 0
    %s109 = sadd.s32 %s108, 1
    %s110 = scalar_select %p107, %s108, %s109
    %p113 = pneg %p107
    %p114 = scmp.eq.s32.totalorder %s9, 1
    %p115 = por %p113, %p114
    %p116 = scmp.ne.s32.totalorder %s108, %s111
    %p117 = scmp.eq.s32.totalorder %s9, 0
    %p118 = por %p116, %p117
    %p119 = scmp.ne.s32.totalorder %s108, %s111
    %p120 = scmp.eq.s32.totalorder %s14, 1
    %p121 = por %p119, %p120
    %p122 = scmp.ne.s32.totalorder %s111, %s112
    %p123 = scmp.eq.s32.totalorder %s14, 0
    %p124 = por %p122, %p123
    %p125 = scmp.ne.s32.totalorder %s111, %s112
    %p126 = scmp.eq.s32.totalorder %s15, 1
    %p127 = por %p125, %p126
    %p129 = scmp.ne.s32.totalorder %s112, %s128
    %p130 = scmp.eq.s32.totalorder %s15, 0
    %p131 = por %p129, %p130
    %p132 = scmp.le.s32.totalorder 1, %s9
    %p133 = scmp.lt.s32.totalorder %s9, 3
    %p134 = pnand %p132, %p133
    %p135 = pneg %p134
    // Predicated region
    $region9: #{balanced_cross_entropy_loss.1} parent=5 // pred_check
      _
    $region10: #{balanced_cross_entropy_loss.1} parent=5 // pred_check_branch
      %137 = sbr.rel (%p134) target = $region12
    $region11: #{balanced_cross_entropy_loss.1} parent=5 // pred_region
      %s138 = ssub.s32 %s9, 1
      // Predicated region
      $region13: #{balanced_cross_entropy_loss.1} parent=11 // pred_check
        %p139 = pneg %p98
      $region14: #{balanced_cross_entropy_loss.1} parent=11 // pred_check_branch
        %141 = sbr.rel (%p139) target = $region16
      $region15: #{balanced_cross_entropy_loss.1} parent=11 // pred_region
        _
      $region16: #{balanced_cross_entropy_loss.1} parent=11 // pred_fallthru
        _
    $region12: #{balanced_cross_entropy_loss.1} parent=5 // pred_fallthru
      _
    %p142 = scmp.lt.s32.totalorder %s9, 2
    // Predicated region
    $region17: #{balanced_cross_entropy_loss.1} parent=5 // pred_check
      %p143 = pneg %p142
    $region18: #{balanced_cross_entropy_loss.1} parent=5 // pred_check_branch
      %145 = sbr.rel (%p143) target = $region20
    $region19: #{balanced_cross_entropy_loss.1} parent=5 // pred_region
      // Predicated region
      $region21: #{balanced_cross_entropy_loss.1} parent=19 // pred_check
        %p146 = pneg %p43
      $region22: #{balanced_cross_entropy_loss.1} parent=19 // pred_check_branch
        %148 = sbr.rel (%p146) target = $region24
      $region23: #{balanced_cross_entropy_loss.1} parent=19 // pred_region
        %s149 = sadd.s32 %s16, %s17
        %p150 = scmp.lt.s32.totalorder %s149, 1
        %s151 = scalar_select %p150, %s149, 1
        %s152 = smul.addr %s151, 4
        %s153 = scalar_lea.vmem %s0, %s152
        %s154 = sadd.s32 %s16, %s17
      $region24: #{balanced_cross_entropy_loss.1} parent=19 // pred_fallthru
        _
      // Predicated region
      $region25: #{balanced_cross_entropy_loss.1} parent=19 // pred_check
        %p155 = pneg %p71
      $region26: #{balanced_cross_entropy_loss.1} parent=19 // pred_check_branch
        %157 = sbr.rel (%p155) target = $region28
      $region27: #{balanced_cross_entropy_loss.1} parent=19 // pred_region
        %s158 = sadd.s32 %s16, %s17
        %p159 = scmp.lt.s32.totalorder %s158, 1
        %s160 = scalar_select %p159, %s158, 1
        %s161 = scalar_lea.vmem %s1, %s160
        %s162 = sadd.s32 %s16, %s17
      $region28: #{balanced_cross_entropy_loss.1} parent=19 // pred_fallthru
        _
    $region20: #{balanced_cross_entropy_loss.1} parent=5 // pred_fallthru
      _
    %p163 = scmp.le.s32.totalorder 1, %s9
    %p164 = scmp.lt.s32.totalorder %s9, 3
    %p165 = pnand %p163, %p164
    %p166 = pneg %p165
    // Predicated region
    $region29: #{balanced_cross_entropy_loss.1} parent=5 // pred_check
      _
    $region30: #{balanced_cross_entropy_loss.1} parent=5 // pred_check_branch
      %168 = sbr.rel (%p165) target = $region32
    $region31: #{balanced_cross_entropy_loss.1} parent=5 // pred_region
      %s169 = ssub.s32 %s9, 1
      %s170 = sadd.s32 %s18, %s19
      %p171 = scmp.lt.s32.totalorder %s170, 1
      %s172 = scalar_select %p171, %s170, 1
      %s173 = smul.addr %s172, 4
      %s174 = scalar_lea.vmem %s0, %s173
      %p175 = pneg %p49
      %p176 = pneg %p46
      %s177 = sadd.s32 %s18, %s19
      %p178 = scmp.lt.s32.totalorder %s177, 1
      %s179 = scalar_select %p178, %s177, 1
      %s180 = scalar_lea.vmem %s1, %s179
      %p181 = pneg %p77
      %p182 = pneg %p74
      %p183 = pneg %p98
      %p184 = pneg %p95
      %p185 = pneg %p124
      %p186 = pneg %p121
      %p187 = scmp.lt.s32.totalorder %s18, 1
      %s188 = scalar_select %p187, %s18, 1
      %s189 = scalar_lea.vmem %s3, %s188
      %s190 = sadd.s32 %s18, %s19
      %p191 = scmp.lt.s32.totalorder %s190, 1
      %s192 = scalar_select %p191, %s190, 1
      %s193 = smul.addr %s192, 4
      %s194 = scalar_lea.vmem %s0, %s193
      %s195 = sadd.s32 %s18, %s19
      %s196 = sadd.s32 %s18, %s19
      %p197 = scmp.lt.s32.totalorder %s196, 1
      %s198 = scalar_select %p197, %s196, 1
      %s199 = scalar_lea.vmem %s1, %s198
      %s200 = sadd.s32 %s18, %s19
      %p201 = scmp.lt.s32.totalorder %s18, 1
      %s202 = scalar_select %p201, %s18, 1
      %s203 = scalar_lea.vmem %s3, %s202
      %p204 = scmp.eq.s32.totalorder %s19, 0
      // Predicated region
      $region33: #{balanced_cross_entropy_loss.1} parent=31 // pred_check
        %p205 = pneg %p204
      $region34: #{balanced_cross_entropy_loss.1} parent=31 // pred_check_branch
        %207 = sbr.rel (%p205) target = $region36
      $region35: #{balanced_cross_entropy_loss.1} parent=31 // pred_region
        %208 = vst [vmem:[#allocation2] sm:$0x1] 0.0
      $region36: #{balanced_cross_entropy_loss.1} parent=31 // pred_fallthru
        _
      %v209 = vld [vmem:[%s194] sm:$0x7]
      %v210 = vld [vmem:[%s199] sm:$0x1]
      %v211 = vld [vmem:[%s2] sm:$0x7]
      %vm212 = vcmask 1042432
      %v213 = vsel %vm212, %v209, -inf
      %v214 = vrot.slane %v213, 4
      %v215 = vmax.f32 %v213, %v214
      %v216 = vrot.slane %v215, 2
      %v217 = vmax.f32 %v215, %v216
      %v218 = vrot.slane %v217, 1
      %v219 = vmax.f32 %v217, %v218
      %v220 = vsub.f32 %v209, %v219
      %v221 = vmul.f32 %v220, 1.442695
      %v222 = vpow.pop %v221
      %v223 = vsel %vm212, %v222, 0.0
      %v224 = vrot.slane %v223, 4
      %v225 = vadd.f32 %v223, %v224
      %v226 = vrot.slane %v225, 2
      %v227 = vadd.f32 %v225, %v226
      %v228 = vrot.slane %v227, 1
      %v229 = vadd.f32 %v227, %v228
      %v230 = vlog2.pop %v229
      %v231 = vmul.f32 %v230, 0.6931472
      %v232 = vlaneseq
      %v233 = vshrl.u32 %v232, 7
      %v234 = vlaneseq
      %v235 = vshrl.u32 %v234, 7
      %v236 = vsub.s32 0, %v235
      %v237 = vrot.slane %v210, %v236
      %vm238 = vcmp.eq.s32.totalorder %v233, %v237
      %v239 = vsel %vm238, 1, 0
      %v240 = vcvt.s32.f32 %v239
      %v241 = vmul.f32 %v240, %v220
      %v242 = vsel %vm212, %v241, 0.0
      %v243 = vrot.slane %v242, 4
      %v244 = vadd.f32 %v242, %v243
      %v245 = vrot.slane %v244, 2
      %v246 = vadd.f32 %v244, %v245
      %v247 = vrot.slane %v246, 1
      %v248 = vadd.f32 %v246, %v247
      %250 = vset.pattern.permute.xlu0 0
      %251 = vperm.xlu0 %250, %v211
      %v252 = vpop.permute.xlu0 %251
      %v254 = vmul.f32 %v240, %v252
      %v255 = vsel %vm212, %v254, 0.0
      %v256 = vrot.slane %v255, 4
      %v257 = vadd.f32 %v255, %v256
      %v258 = vrot.slane %v257, 2
      %v259 = vadd.f32 %v257, %v258
      %v260 = vrot.slane %v259, 1
      %v261 = vadd.f32 %v259, %v260
      %v262 = vld [vmem:[#allocation2] sm:$0x1]
      %v263 = vsub.f32 %v231, %v248
      %v264 = vmul.f32 %v261, %v263
      %v265 = vadd.f32 %v262, %v264
      %266 = vst [vmem:[#allocation2] sm:$0x1] %v265
      // Predicated region
      $region37: #{balanced_cross_entropy_loss.1} parent=31 // pred_check
        %p267 = pneg %p204
      $region38: #{balanced_cross_entropy_loss.1} parent=31 // pred_check_branch
        %269 = sbr.rel (%p267) target = $region40
      $region39: #{balanced_cross_entropy_loss.1} parent=31 // pred_region
        %v270 = vld [vmem:[#allocation2] sm:$0x1]
        %vm271 = vcmask 1040384
        %v272 = vsel %vm271, %v270, 0.0
        %273 = vadd.xlane.f32.xlu0 %v272
        %v274 = vpop.xlane.xlu0 %273
        %v275 = vmul.f32 %v274, 0.125
        %vm276 = vcmask 0
        %277 = vst.msk [vmem:[%s203] sm:$0x1] %vm276, %v275
      $region40: #{balanced_cross_entropy_loss.1} parent=31 // pred_fallthru
        _
      %p278 = scmp.lt.s32.totalorder %s18, 1
      %s279 = scalar_select %p278, %s18, 1
      %s280 = scalar_lea.vmem %s3, %s279
      // Predicated region
      $region41: #{balanced_cross_entropy_loss.1} parent=31 // pred_check
        %p281 = pneg %p121
      $region42: #{balanced_cross_entropy_loss.1} parent=31 // pred_check_branch
        %283 = sbr.rel (%p281) target = $region44
      $region43: #{balanced_cross_entropy_loss.1} parent=31 // pred_region
        _
      $region44: #{balanced_cross_entropy_loss.1} parent=31 // pred_fallthru
        _
    $region32: #{balanced_cross_entropy_loss.1} parent=5 // pred_fallthru
      _
    %p284 = scmp.le.s32.totalorder 2, %s9
    // Predicated region
    $region45: #{balanced_cross_entropy_loss.1} parent=5 // pred_check
      %p285 = pneg %p284
    $region46: #{balanced_cross_entropy_loss.1} parent=5 // pred_check_branch
      %287 = sbr.rel (%p285) target = $region48
    $region47: #{balanced_cross_entropy_loss.1} parent=5 // pred_region
      %s288 = ssub.s32 %s9, 2
      // Predicated region
      $region49: #{balanced_cross_entropy_loss.1} parent=47 // pred_check
        %p289 = pneg %p127
      $region50: #{balanced_cross_entropy_loss.1} parent=47 // pred_check_branch
        %291 = sbr.rel (%p289) target = $region52
      $region51: #{balanced_cross_entropy_loss.1} parent=47 // pred_region
        %p292 = scmp.lt.s32.totalorder %s20, 1
        %s293 = scalar_select %p292, %s20, 1
        %s294 = scalar_lea.vmem %s3, %s293
      $region52: #{balanced_cross_entropy_loss.1} parent=47 // pred_fallthru
        _
    $region48: #{balanced_cross_entropy_loss.1} parent=5 // pred_fallthru
      _
  $region6: #{balanced_cross_entropy_loss.1} parent=0 // loop_footer
    %s13 = sadd.s32 1, %s9
  $region7: #{balanced_cross_entropy_loss.1} parent=0 // loop_footer_branch
    %8 = sbr.rel target = $region3
  $region8: #{balanced_cross_entropy_loss.1} parent=0 // loop_exit
    _

</llo_original>
